<compile_context>
chip_gen: v7x
topology: tpu7x:2x2x1
jax: 0.10.0
libtpu: 0.0.40
codegen_flags: <defaults>
</compile_context>

<pallas_src>
import functools

import jax
import jax.numpy as jnp
from jax import lax
from jax.experimental import pallas as pl
from jax.experimental.pallas import tpu as pltpu

IGNORE_INDEX = 255
_UNROLL_C_MAX = 32      # fully unroll the class loop up to this many classes
_MIN_GRID_STEPS = 8     # keep the pipeline busy and feed both v7x TensorCores


def _ce_kernel(logits_ref, target_ref, sum_ref, cnt_ref, *,
               C, Hb, tp, sub, Weff, ragged, unroll_classes):
    """One (image, row-block) tile -> partial (loss sum, valid count).

    logits_ref: (C, tp, Weff) native dtype; target_ref: (tp, Weff) int32.
    Class reductions run on (sub, Weff) chunks so accumulators stay in vregs.
    """
    hi = pl.program_id(1)
    base_row = hi * tp

    def chunk(r0, nrows):
        tgt = target_ref[pl.ds(r0, nrows), :]
        x0 = logits_ref[0, pl.ds(r0, nrows), :]

        # Pass 1: running max over classes + select the raw target logit.
        # Stays in the input dtype (bf16 max/compare are native on v6e/v7x).
        m = x0
        xt = x0
        if unroll_classes:
            for c in range(1, C):
                xc = logits_ref[c, pl.ds(r0, nrows), :]
                m = jnp.maximum(m, xc)
                xt = jnp.where(tgt == c, xc, xt)
        else:
            def p1(c, carry):
                mm, xx = carry
                xc = logits_ref[c, pl.ds(r0, nrows), :]
                return jnp.maximum(mm, xc), jnp.where(tgt == c, xc, xx)
            m, xt = lax.fori_loop(1, C, p1, (m, xt), unroll=4)

        # Pass 2: sum of exp(x - m), accumulated in f32.
        s0 = jnp.zeros((nrows, Weff), jnp.float32)
        if unroll_classes:
            s = s0
            for c in range(C):
                xc = logits_ref[c, pl.ds(r0, nrows), :]
                s = s + jnp.exp((xc - m).astype(jnp.float32))
        else:
            def p2(c, ss):
                xc = logits_ref[c, pl.ds(r0, nrows), :]
                return ss + jnp.exp((xc - m).astype(jnp.float32))
            s = lax.fori_loop(0, C, p2, s0, unroll=4)

        # Valid pixels: not ignore_index, and inside the real array for the
        # ragged last row-block. Keep as a select so masked-row garbage/NaN
        # cannot propagate.
        valid = tgt != IGNORE_INDEX
        if ragged:
            row = lax.broadcasted_iota(jnp.int32, (nrows, Weff), 0)
            valid = valid & ((base_row + r0 + row) < Hb)

        # per-pixel CE = logsumexp(x) - x[target] = log(s) - (x[target] - m)
        loss = jnp.where(
            valid,
            jnp.log(s) - (xt.astype(jnp.float32) - m.astype(jnp.float32)),
            0.0)
        return loss, valid.astype(jnp.int32)

    n_full = tp // sub
    rem = tp - n_full * sub

    if n_full <= 1:
        la, ca = chunk(0, sub)
    else:
        def body(i, carry):
            lacc, cacc = carry
            r0 = pl.multiple_of(i * sub, sub)
            loss, cnt = chunk(r0, sub)
            return lacc + loss, cacc + cnt

        la, ca = lax.fori_loop(
            0, n_full, body,
            (jnp.zeros((sub, Weff), jnp.float32),
             jnp.zeros((sub, Weff), jnp.int32)))

    total = jnp.sum(la)
    count = jnp.sum(ca)
    if rem:
        loss_r, cnt_r = chunk(n_full * sub, rem)
        total = total + jnp.sum(loss_r)
        count = count + jnp.sum(cnt_r)

    sum_ref[...] = total.reshape(1, 1)
    cnt_ref[...] = count.reshape(1, 1)


def _vmem_budget_bytes():
    """(single-buffer tile budget, scoped vmem limit) per TPU generation."""
    try:
        info = pltpu.get_tpu_info()
        cap = getattr(info, "vmem_capacity_bytes", None) or (64 << 20)
    except Exception:
        cap = 64 << 20
    if cap >= (100 << 20):        # 128 MiB-class chips (v5e / v6e)
        return 20 << 20, 64 << 20
    return 8 << 20, 36 << 20      # 64 MiB-class (v7x): leave headroom


def _choose_tiles(C, Hb, Weff, N, itemsize, budget_bytes):
    """Pick (row-block size tp, register-resident sub-tile rows sub)."""
    lane_w = ((Weff + 127) // 128) * 128
    gran = 16 if itemsize < 4 else 8          # packed-sublane friendly for bf16
    sub = max(gran, ((4096 // lane_w) // gran) * gran)   # ~4 f32 vregs / slab
    if Hb <= sub:
        return Hb, Hb
    per_row = (C * itemsize + 4) * lane_w     # logits + int32 target, per pixel row
    tp = budget_bytes // per_row
    blocks_needed = -(-_MIN_GRID_STEPS // max(N, 1))
    if blocks_needed > 1 and Hb // blocks_needed >= sub:
        tp = min(tp, Hb // blocks_needed)     # guarantee enough grid steps
    if tp >= Hb:
        return Hb, sub
    return max(sub, (tp // sub) * sub), sub


@jax.jit
def cross_entropy_loss_2d(output_nchw, target_nhw):
    """output_nchw: (N, C, H, W) float logits (f32/bf16); target_nhw: (N, H, W) ints.

    Matches nn.CrossEntropyLoss(weight=None, ignore_index=255, reduction='mean').
    Notes: all-ignored input gives 0/0 = NaN (same as PyTorch); targets outside
    [0, C) other than 255 are treated as x[target] = x[0] instead of raising;
    valid-pixel count is accumulated in int32.
    """
    N, C, H, W = output_nchw.shape
    target = target_nhw.astype(jnp.int32)
    M = H * W

    # Lane-dense pixel layout when possible (free metadata reshape on NCHW).
    if M % 128 == 0:
        Hb, Weff = M // 128, 128
        logits = output_nchw.reshape(N, C, Hb, Weff)
        target = target.reshape(N, Hb, Weff)
    else:
        Hb, Weff = H, W
        logits = output_nchw

    itemsize = jnp.dtype(output_nchw.dtype).itemsize
    budget, vmem_limit = _vmem_budget_bytes()
    tp, sub = _choose_tiles(C, Hb, Weff, N, itemsize, budget)
    n_hb = pl.cdiv(Hb, tp)
    grid = (N, n_hb)

    kernel = functools.partial(
        _ce_kernel, C=C, Hb=Hb, tp=tp, sub=sub, Weff=Weff,
        ragged=(Hb % tp != 0), unroll_classes=(C <= _UNROLL_C_MAX))

    Mtot = N * M
    cost = pl.CostEstimate(
        flops=5 * Mtot * C + 8 * Mtot,
        transcendentals=Mtot * C + Mtot,
        bytes_accessed=itemsize * Mtot * C + 4 * Mtot + 8 * N * n_hb,
    )

    sums, cnts = pl.pallas_call(
        kernel,
        out_shape=(
            jax.ShapeDtypeStruct((N, n_hb, 1, 1), jnp.float32),
            jax.ShapeDtypeStruct((N, n_hb, 1, 1), jnp.int32),
        ),
        grid_spec=pltpu.PrefetchScalarGridSpec(
            num_scalar_prefetch=0,
            grid=grid,
            in_specs=[
                # logits: classes leading, lane-dense (tp, Weff) pixel slab per class
                pl.BlockSpec((None, C, tp, Weff), lambda n, hi: (n, 0, hi, 0)),
                # target: (tp, Weff) int32 block
                pl.BlockSpec((None, tp, Weff), lambda n, hi: (n, hi, 0)),
            ],
            out_specs=(
                pl.BlockSpec((None, None, 1, 1), lambda n, hi: (n, hi, 0, 0)),
                pl.BlockSpec((None, None, 1, 1), lambda n, hi: (n, hi, 0, 0)),
            ),
        ),
        compiler_params=pltpu.CompilerParams(
            dimension_semantics=("parallel", "parallel"),
            vmem_limit_bytes=vmem_limit,
        ),
        cost_estimate=cost,
    )(logits, target)

    total = jnp.sum(sums)
    count = jnp.sum(cnts).astype(jnp.float32)
    return total / count


def _reference_loss(output_nchw, target_nhw):
    """Pure-JAX reference of nn.CrossEntropyLoss(ignore_index=255, reduction='mean')."""
    N, C, H, W = output_nchw.shape
    logits = jnp.transpose(output_nchw, (0, 2, 3, 1)).reshape(-1, C).astype(jnp.float32)
    target = target_nhw.reshape(-1).astype(jnp.int32)
    logp = jax.nn.log_softmax(logits, axis=-1)
    valid = target != IGNORE_INDEX
    tgt_safe = jnp.where(valid, target, 0)
    nll = -jnp.take_along_axis(logp, tgt_safe[:, None], axis=-1)[:, 0]
    nll = jnp.where(valid, nll, 0.0)
    return jnp.sum(nll) / jnp.sum(valid.astype(jnp.float32))


if __name__ == "__main__":
    key = jax.random.PRNGKey(0)
    k1, k2, k3 = jax.random.split(key, 3)

    N, C, H, W = 2, 4, 16, 16
    output = jax.random.normal(k1, (N, C, H, W), dtype=jnp.float32)
    target = jax.random.randint(k2, (N, H, W), 0, C, dtype=jnp.int32)
    # sprinkle some ignore_index pixels to exercise masking
    ignore_mask = jax.random.uniform(k3, (N, H, W)) < 0.1
    target = jnp.where(ignore_mask, IGNORE_INDEX, target)

    loss = cross_entropy_loss_2d(output, target)
    jax.block_until_ready(loss)

    ref = _reference_loss(output, target)
    if not jnp.allclose(loss, ref, rtol=1e-5, atol=1e-5):
        raise AssertionError(f"mismatch: pallas={loss} ref={ref}")

    print("KERNEL_OK")
</pallas_src>

<mosaic_0001>
module attributes {stable_mosaic.version = 11 : i64} {
  func.func @_ce_kernel(%arg0: i32, %arg1: i32, %arg2: memref<1x4x2x128xf32, #tpu.memory_space<vmem>>, %arg3: memref<1x2x128xi32, #tpu.memory_space<vmem>>, %arg4: memref<1x1x1x1xf32, #tpu.memory_space<vmem>>, %arg5: memref<1x1x1x1xi32, #tpu.memory_space<vmem>>) attributes {dimension_semantics = [#tpu.dimension_semantics<parallel>, #tpu.dimension_semantics<parallel>], iteration_bounds = array<i64: 2, 1>, scalar_prefetch = 0 : i64, scratch_operands = 0 : i64, tpu.core_type = #tpu.core_type<tc>, window_params = [{transform_indices = @transform_0, window_bounds = array<i64: 1, 4, 2, 128>}, {transform_indices = @transform_1, window_bounds = array<i64: 1, 2, 128>}, {transform_indices = @transform_2, window_bounds = array<i64: 1, 1, 1, 1>}, {transform_indices = @transform_3, window_bounds = array<i64: 1, 1, 1, 1>}]} {
    %c0 = arith.constant 0 : index
    %c0_0 = arith.constant 0 : index
    %c0_1 = arith.constant 0 : index
    %0 = vector.load %arg3[%c0, %c0_0, %c0_1] : memref<1x2x128xi32, #tpu.memory_space<vmem>>, vector<1x2x128xi32>
    %1 = vector.shape_cast %0 : vector<1x2x128xi32> to vector<2x128xi32>
    %c0_2 = arith.constant 0 : index
    %c0_3 = arith.constant 0 : index
    %c0_4 = arith.constant 0 : index
    %c0_5 = arith.constant 0 : index
    %2 = vector.load %arg2[%c0_2, %c0_3, %c0_4, %c0_5] : memref<1x4x2x128xf32, #tpu.memory_space<vmem>>, vector<1x1x2x128xf32>
    %3 = vector.shape_cast %2 : vector<1x1x2x128xf32> to vector<2x128xf32>
    %c0_6 = arith.constant 0 : index
    %c1 = arith.constant 1 : index
    %c0_7 = arith.constant 0 : index
    %c0_8 = arith.constant 0 : index
    %4 = vector.load %arg2[%c0_6, %c1, %c0_7, %c0_8] : memref<1x4x2x128xf32, #tpu.memory_space<vmem>>, vector<1x1x2x128xf32>
    %5 = vector.shape_cast %4 : vector<1x1x2x128xf32> to vector<2x128xf32>
    %6 = arith.maximumf %3, %5 : vector<2x128xf32>
    %c1_i32 = arith.constant 1 : i32
    %7 = vector.broadcast %c1_i32 : i32 to vector<2x128xi32>
    %8 = arith.cmpi eq, %1, %7 : vector<2x128xi32>
    %9 = arith.select %8, %5, %3 : vector<2x128xi1>, vector<2x128xf32>
    %c0_9 = arith.constant 0 : index
    %c2 = arith.constant 2 : index
    %c0_10 = arith.constant 0 : index
    %c0_11 = arith.constant 0 : index
    %10 = vector.load %arg2[%c0_9, %c2, %c0_10, %c0_11] : memref<1x4x2x128xf32, #tpu.memory_space<vmem>>, vector<1x1x2x128xf32>
    %11 = vector.shape_cast %10 : vector<1x1x2x128xf32> to vector<2x128xf32>
    %12 = arith.maximumf %6, %11 : vector<2x128xf32>
    %c2_i32 = arith.constant 2 : i32
    %13 = vector.broadcast %c2_i32 : i32 to vector<2x128xi32>
    %14 = arith.cmpi eq, %1, %13 : vector<2x128xi32>
    %15 = arith.select %14, %11, %9 : vector<2x128xi1>, vector<2x128xf32>
    %c0_12 = arith.constant 0 : index
    %c3 = arith.constant 3 : index
    %c0_13 = arith.constant 0 : index
    %c0_14 = arith.constant 0 : index
    %16 = vector.load %arg2[%c0_12, %c3, %c0_13, %c0_14] : memref<1x4x2x128xf32, #tpu.memory_space<vmem>>, vector<1x1x2x128xf32>
    %17 = vector.shape_cast %16 : vector<1x1x2x128xf32> to vector<2x128xf32>
    %18 = arith.maximumf %12, %17 : vector<2x128xf32>
    %c3_i32 = arith.constant 3 : i32
    %19 = vector.broadcast %c3_i32 : i32 to vector<2x128xi32>
    %20 = arith.cmpi eq, %1, %19 : vector<2x128xi32>
    %21 = arith.select %20, %17, %15 : vector<2x128xi1>, vector<2x128xf32>
    %cst = arith.constant 0.000000e+00 : f32
    %22 = vector.broadcast %cst : f32 to vector<2x128xf32>
    %c0_15 = arith.constant 0 : index
    %c0_16 = arith.constant 0 : index
    %c0_17 = arith.constant 0 : index
    %c0_18 = arith.constant 0 : index
    %23 = vector.load %arg2[%c0_15, %c0_16, %c0_17, %c0_18] : memref<1x4x2x128xf32, #tpu.memory_space<vmem>>, vector<1x1x2x128xf32>
    %24 = vector.shape_cast %23 : vector<1x1x2x128xf32> to vector<2x128xf32>
    %25 = arith.subf %24, %18 : vector<2x128xf32>
    %26 = math.exp %25 : vector<2x128xf32>
    %27 = arith.addf %22, %26 : vector<2x128xf32>
    %c0_19 = arith.constant 0 : index
    %c1_20 = arith.constant 1 : index
    %c0_21 = arith.constant 0 : index
    %c0_22 = arith.constant 0 : index
    %28 = vector.load %arg2[%c0_19, %c1_20, %c0_21, %c0_22] : memref<1x4x2x128xf32, #tpu.memory_space<vmem>>, vector<1x1x2x128xf32>
    %29 = vector.shape_cast %28 : vector<1x1x2x128xf32> to vector<2x128xf32>
    %30 = arith.subf %29, %18 : vector<2x128xf32>
    %31 = math.exp %30 : vector<2x128xf32>
    %32 = arith.addf %27, %31 : vector<2x128xf32>
    %c0_23 = arith.constant 0 : index
    %c2_24 = arith.constant 2 : index
    %c0_25 = arith.constant 0 : index
    %c0_26 = arith.constant 0 : index
    %33 = vector.load %arg2[%c0_23, %c2_24, %c0_25, %c0_26] : memref<1x4x2x128xf32, #tpu.memory_space<vmem>>, vector<1x1x2x128xf32>
    %34 = vector.shape_cast %33 : vector<1x1x2x128xf32> to vector<2x128xf32>
    %35 = arith.subf %34, %18 : vector<2x128xf32>
    %36 = math.exp %35 : vector<2x128xf32>
    %37 = arith.addf %32, %36 : vector<2x128xf32>
    %c0_27 = arith.constant 0 : index
    %c3_28 = arith.constant 3 : index
    %c0_29 = arith.constant 0 : index
    %c0_30 = arith.constant 0 : index
    %38 = vector.load %arg2[%c0_27, %c3_28, %c0_29, %c0_30] : memref<1x4x2x128xf32, #tpu.memory_space<vmem>>, vector<1x1x2x128xf32>
    %39 = vector.shape_cast %38 : vector<1x1x2x128xf32> to vector<2x128xf32>
    %40 = arith.subf %39, %18 : vector<2x128xf32>
    %41 = math.exp %40 : vector<2x128xf32>
    %42 = arith.addf %37, %41 : vector<2x128xf32>
    %c255_i32 = arith.constant 255 : i32
    %43 = vector.broadcast %c255_i32 : i32 to vector<2x128xi32>
    %44 = arith.cmpi ne, %1, %43 : vector<2x128xi32>
    %45 = math.log %42 : vector<2x128xf32>
    %46 = arith.subf %21, %18 : vector<2x128xf32>
    %47 = arith.subf %45, %46 : vector<2x128xf32>
    %cst_31 = arith.constant 0.000000e+00 : f32
    %48 = vector.broadcast %cst_31 : f32 to vector<2x128xf32>
    %49 = arith.select %44, %47, %48 : vector<2x128xi1>, vector<2x128xf32>
    %50 = arith.extui %44 : vector<2x128xi1> to vector<2x128xi32>
    %51 = vector.shape_cast %49 : vector<2x128xf32> to vector<1x2x128xf32>
    %cst_32 = arith.constant dense<0.000000e+00> : vector<1xf32>
    %52 = vector.multi_reduction <add>, %51, %cst_32 [1, 2] : vector<1x2x128xf32> to vector<1xf32>
    %53 = vector.shape_cast %52 : vector<1xf32> to vector<1x1x1xf32>
    %54 = vector.extract %53[0, 0, 0] : f32 from vector<1x1x1xf32>
    %55 = vector.shape_cast %50 : vector<2x128xi32> to vector<1x2x128xi32>
    %cst_33 = arith.constant dense<0> : vector<1xi32>
    %56 = vector.multi_reduction <add>, %55, %cst_33 [1, 2] : vector<1x2x128xi32> to vector<1xi32>
    %57 = vector.shape_cast %56 : vector<1xi32> to vector<1x1x1xi32>
    %58 = vector.extract %57[0, 0, 0] : i32 from vector<1x1x1xi32>
    %59 = vector.broadcast %54 : f32 to vector<1x1xf32>
    %c0_34 = arith.constant 0 : index
    %c0_35 = arith.constant 0 : index
    %c0_36 = arith.constant 0 : index
    %c0_37 = arith.constant 0 : index
    %60 = vector.load %arg4[%c0_34, %c0_35, %c0_36, %c0_37] : memref<1x1x1x1xf32, #tpu.memory_space<vmem>>, vector<1x1x1x1xf32>
    %61 = vector.shape_cast %60 : vector<1x1x1x1xf32> to vector<1x1xf32>
    %62 = vector.shape_cast %59 : vector<1x1xf32> to vector<1x1x1x1xf32>
    tpu.vector_store %arg4[%c0_34, %c0_35, %c0_36, %c0_37], %62 {strides = array<i32>} : memref<1x1x1x1xf32, #tpu.memory_space<vmem>>, vector<1x1x1x1xf32>,
    %63 = vector.broadcast %58 : i32 to vector<1x1xi32>
    %c0_38 = arith.constant 0 : index
    %c0_39 = arith.constant 0 : index
    %c0_40 = arith.constant 0 : index
    %c0_41 = arith.constant 0 : index
    %64 = vector.load %arg5[%c0_38, %c0_39, %c0_40, %c0_41] : memref<1x1x1x1xi32, #tpu.memory_space<vmem>>, vector<1x1x1x1xi32>
    %65 = vector.shape_cast %64 : vector<1x1x1x1xi32> to vector<1x1xi32>
    %66 = vector.shape_cast %63 : vector<1x1xi32> to vector<1x1x1x1xi32>
    tpu.vector_store %arg5[%c0_38, %c0_39, %c0_40, %c0_41], %66 {strides = array<i32>} : memref<1x1x1x1xi32, #tpu.memory_space<vmem>>, vector<1x1x1x1xi32>,
    return
  }
  func.func @transform_0(%arg0: i32, %arg1: i32) -> (i32, i32, i32, i32) {
    %c0_i32 = arith.constant 0 : i32
    %c0_i32_0 = arith.constant 0 : i32
    %c0_i32_1 = arith.constant 0 : i32
    return %arg0, %c0_i32, %arg1, %c0_i32_0 : i32, i32, i32, i32
  }
  func.func @transform_1(%arg0: i32, %arg1: i32) -> (i32, i32, i32) {
    %c0_i32 = arith.constant 0 : i32
    %c0_i32_0 = arith.constant 0 : i32
    return %arg0, %arg1, %c0_i32 : i32, i32, i32
  }
  func.func @transform_2(%arg0: i32, %arg1: i32) -> (i32, i32, i32, i32) {
    %c0_i32 = arith.constant 0 : i32
    %c0_i32_0 = arith.constant 0 : i32
    %c0_i32_1 = arith.constant 0 : i32
    return %arg0, %arg1, %c0_i32, %c0_i32_0 : i32, i32, i32, i32
  }
  func.func @transform_3(%arg0: i32, %arg1: i32) -> (i32, i32, i32, i32) {
    %c0_i32 = arith.constant 0 : i32
    %c0_i32_0 = arith.constant 0 : i32
    %c0_i32_1 = arith.constant 0 : i32
    return %arg0, %arg1, %c0_i32, %c0_i32_0 : i32, i32, i32, i32
  }
}

</mosaic_0001>

<llo_original>
// kernel: cross_entropy_loss_2d.1
$region0: #{cross_entropy_loss_2d.1}
  #allocation0 [shape = 'u32[]', space=smem, size = 0x4, offset = 0x4, fixed_abs, tag = 'smem constant byte address 0x4 - core index']
  #allocation1 [shape = 'u32[144,128]{1,0:T(1,128)}', space=vmem, size = 0x12000, scoped, tag = 'internal scratch']
  %s0 = inlined_call_operand.vmem [shape: f32[2,4,2,128], index: 0, kind: input, shape index: {}]
  %s1 = inlined_call_operand.vmem [shape: s32[2,2,128], index: 1, kind: input, shape index: {}]
  %s2 = inlined_call_operand.vmem [shape: f32[2,1,1,1], index: 2, kind: output, shape index: {0}]
  %s3 = inlined_call_operand.vmem [shape: s32[2,1,1,1], index: 3, kind: output, shape index: {1}]
  %4 = xla_tuple %s2, %s3
  %s5 = sld [smem:[#allocation0]]
  $region49: #{cross_entropy_loss_2d.1} parent=0
    _
  %s7 = ssub.s32 1, %s5
  %s8 = scalar_select 0, %s7, %s5
  loop: start=0, step=1, limit=4
  $region2: #{cross_entropy_loss_2d.1} parent=0 // loop_pre_header
    _
  $region3: #{cross_entropy_loss_2d.1} parent=0 // loop_header
    %s10 = sphi 0, %s14
    %p11 = scmp.ge.s32.totalorder %s10, 4
    %s17 = sphi 0, %s29
    %s18 = sphi 0, %s25
    %s19 = sphi 0, %s17
    %s20 = sphi 0, %s18
    %s21 = sphi 0, %s19
    %s22 = sphi 0, %s20
    %s34 = sphi 0, %s36
    %s37 = sphi 0, %s34
    %s38 = sphi 0, %s37
    %s54 = sphi 0, %s38
    %s62 = sphi 0, %s64
    %s65 = sphi 0, %s62
    %s66 = sphi 0, %s65
    %s82 = sphi 0, %s66
    %s90 = sphi 0, %s92
    %s93 = sphi 0, %s90
    %s94 = sphi 0, %s93
    %s110 = sphi 0, %s94
    %s118 = sphi 0, %s120
    %s121 = sphi 0, %s118
    %s122 = sphi 0, %s121
    %s138 = sphi 0, %s122
  $region4: #{cross_entropy_loss_2d.1} parent=0 // loop_header_branch
    %13 = sbr.rel (%p11) target = $region8
  $region5: #{cross_entropy_loss_2d.1} parent=0 // loop_body
    %s15 = ssub.s32 %s10, 1
    %s16 = ssub.s32 %s10, 2
    %s23 = sadd.s32 1, %s18
    %p24 = scmp.ge.s32.totalorder %s23, 1
    %s25 = scalar_select %p24, 0, %s23
    %s26 = sadd.s32 1, %s17
    %s27 = scalar_select %p24, %s26, %s17
    %p28 = scmp.ge.s32.totalorder %s27, 2
    %s29 = scalar_select %p28, 0, %s27
    %s30 = ssub.s32 %s17, %s29
    %s31 = ssub.s32 %s18, %s25
    %s32 = sor.u32 %s30, %s31
    %p33 = scmp.eq.s32.totalorder %s32, 0
    %s35 = sadd.s32 %s34, 1
    %s36 = scalar_select %p33, %s34, %s35
    %p39 = pneg %p33
    %p40 = scmp.eq.s32.totalorder %s10, 1
    %p41 = por %p39, %p40
    %p42 = scmp.ne.s32.totalorder %s34, %s37
    %p43 = scmp.eq.s32.totalorder %s10, 0
    %p44 = por %p42, %p43
    %p45 = scmp.ne.s32.totalorder %s34, %s37
    %p46 = scmp.eq.s32.totalorder %s15, 1
    %p47 = por %p45, %p46
    %p48 = scmp.ne.s32.totalorder %s37, %s38
    %p49 = scmp.eq.s32.totalorder %s15, 0
    %p50 = por %p48, %p49
    %p51 = scmp.ne.s32.totalorder %s37, %s38
    %p52 = scmp.eq.s32.totalorder %s16, 1
    %p53 = por %p51, %p52
    %p55 = scmp.ne.s32.totalorder %s38, %s54
    %p56 = scmp.eq.s32.totalorder %s16, 0
    %p57 = por %p55, %p56
    %s58 = ssub.s32 %s17, %s29
    %s59 = ssub.s32 %s18, %s25
    %s60 = sor.u32 %s58, %s59
    %p61 = scmp.eq.s32.totalorder %s60, 0
    %s63 = sadd.s32 %s62, 1
    %s64 = scalar_select %p61, %s62, %s63
    %p67 = pneg %p61
    %p68 = scmp.eq.s32.totalorder %s10, 1
    %p69 = por %p67, %p68
    %p70 = scmp.ne.s32.totalorder %s62, %s65
    %p71 = scmp.eq.s32.totalorder %s10, 0
    %p72 = por %p70, %p71
    %p73 = scmp.ne.s32.totalorder %s62, %s65
    %p74 = scmp.eq.s32.totalorder %s15, 1
    %p75 = por %p73, %p74
    %p76 = scmp.ne.s32.totalorder %s65, %s66
    %p77 = scmp.eq.s32.totalorder %s15, 0
    %p78 = por %p76, %p77
    %p79 = scmp.ne.s32.totalorder %s65, %s66
    %p80 = scmp.eq.s32.totalorder %s16, 1
    %p81 = por %p79, %p80
    %p83 = scmp.ne.s32.totalorder %s66, %s82
    %p84 = scmp.eq.s32.totalorder %s16, 0
    %p85 = por %p83, %p84
    %s86 = ssub.s32 %s17, %s29
    %s87 = ssub.s32 %s18, %s25
    %s88 = sor.u32 %s86, %s87
    %p89 = scmp.eq.s32.totalorder %s88, 0
    %s91 = sadd.s32 %s90, 1
    %s92 = scalar_select %p89, %s90, %s91
    %p95 = pneg %p89
    %p96 = scmp.eq.s32.totalorder %s10, 1
    %p97 = por %p95, %p96
    %p98 = scmp.ne.s32.totalorder %s90, %s93
    %p99 = scmp.eq.s32.totalorder %s10, 0
    %p100 = por %p98, %p99
    %p101 = scmp.ne.s32.totalorder %s90, %s93
    %p102 = scmp.eq.s32.totalorder %s15, 1
    %p103 = por %p101, %p102
    %p104 = scmp.ne.s32.totalorder %s93, %s94
    %p105 = scmp.eq.s32.totalorder %s15, 0
    %p106 = por %p104, %p105
    %p107 = scmp.ne.s32.totalorder %s93, %s94
    %p108 = scmp.eq.s32.totalorder %s16, 1
    %p109 = por %p107, %p108
    %p111 = scmp.ne.s32.totalorder %s94, %s110
    %p112 = scmp.eq.s32.totalorder %s16, 0
    %p113 = por %p111, %p112
    %s114 = ssub.s32 %s17, %s29
    %s115 = ssub.s32 %s18, %s25
    %s116 = sor.u32 %s114, %s115
    %p117 = scmp.eq.s32.totalorder %s116, 0
    %s119 = sadd.s32 %s118, 1
    %s120 = scalar_select %p117, %s118, %s119
    %p123 = pneg %p117
    %p124 = scmp.eq.s32.totalorder %s10, 1
    %p125 = por %p123, %p124
    %p126 = scmp.ne.s32.totalorder %s118, %s121
    %p127 = scmp.eq.s32.totalorder %s10, 0
    %p128 = por %p126, %p127
    %p129 = scmp.ne.s32.totalorder %s118, %s121
    %p130 = scmp.eq.s32.totalorder %s15, 1
    %p131 = por %p129, %p130
    %p132 = scmp.ne.s32.totalorder %s121, %s122
    %p133 = scmp.eq.s32.totalorder %s15, 0
    %p134 = por %p132, %p133
    %p135 = scmp.ne.s32.totalorder %s121, %s122
    %p136 = scmp.eq.s32.totalorder %s16, 1
    %p137 = por %p135, %p136
    %p139 = scmp.ne.s32.totalorder %s122, %s138
    %p140 = scmp.eq.s32.totalorder %s16, 0
    %p141 = por %p139, %p140
    %p142 = scmp.le.s32.totalorder 1, %s10
    %p143 = scmp.lt.s32.totalorder %s10, 3
    %p144 = pnand %p142, %p143
    %p145 = pneg %p144
    // Predicated region
    $region9: #{cross_entropy_loss_2d.1} parent=5 // pred_check
      _
    $region10: #{cross_entropy_loss_2d.1} parent=5 // pred_check_branch
      %147 = sbr.rel (%p144) target = $region12
    $region11: #{cross_entropy_loss_2d.1} parent=5 // pred_region
      %s148 = ssub.s32 %s10, 1
    $region12: #{cross_entropy_loss_2d.1} parent=5 // pred_fallthru
      _
    %p149 = scmp.lt.s32.totalorder %s10, 2
    // Predicated region
    $region13: #{cross_entropy_loss_2d.1} parent=5 // pred_check
      %p150 = pneg %p149
    $region14: #{cross_entropy_loss_2d.1} parent=5 // pred_check_branch
      %152 = sbr.rel (%p150) target = $region16
    $region15: #{cross_entropy_loss_2d.1} parent=5 // pred_region
      // Predicated region
      $region17: #{cross_entropy_loss_2d.1} parent=15 // pred_check
        %p153 = pneg %p44
      $region18: #{cross_entropy_loss_2d.1} parent=15 // pred_check_branch
        %155 = sbr.rel (%p153) target = $region20
      $region19: #{cross_entropy_loss_2d.1} parent=15 // pred_region
        %p156 = scmp.lt.s32.totalorder %s17, 1
        %s157 = scalar_select %p156, %s17, 1
        %p158 = scmp.lt.s32.totalorder %s18, 0
        %s159 = scalar_select %p158, %s18, 0
        %s160 = smul.addr %s157, 4
        %s161 = sadd.s32 %s159, %s160
        %s162 = smul.addr %s161, 2
        %s163 = scalar_lea.vmem %s0, %s162
      $region20: #{cross_entropy_loss_2d.1} parent=15 // pred_fallthru
        _
      // Predicated region
      $region21: #{cross_entropy_loss_2d.1} parent=15 // pred_check
        %p164 = pneg %p72
      $region22: #{cross_entropy_loss_2d.1} parent=15 // pred_check_branch
        %166 = sbr.rel (%p164) target = $region24
      $region23: #{cross_entropy_loss_2d.1} parent=15 // pred_region
        %p167 = scmp.lt.s32.totalorder %s17, 1
        %s168 = scalar_select %p167, %s17, 1
        %p169 = scmp.lt.s32.totalorder %s18, 0
        %s170 = scalar_select %p169, %s18, 0
        %s171 = sadd.s32 %s170, %s168
        %s172 = smul.addr %s171, 2
        %s173 = scalar_lea.vmem %s1, %s172
      $region24: #{cross_entropy_loss_2d.1} parent=15 // pred_fallthru
        _
    $region16: #{cross_entropy_loss_2d.1} parent=5 // pred_fallthru
      _
    %p174 = scmp.le.s32.totalorder 1, %s10
    %p175 = scmp.lt.s32.totalorder %s10, 3
    %p176 = pnand %p174, %p175
    %p177 = pneg %p176
    // Predicated region
    $region25: #{cross_entropy_loss_2d.1} parent=5 // pred_check
      _
    $region26: #{cross_entropy_loss_2d.1} parent=5 // pred_check_branch
      %179 = sbr.rel (%p176) target = $region28
    $region27: #{cross_entropy_loss_2d.1} parent=5 // pred_region
      %s180 = ssub.s32 %s10, 1
      %p181 = scmp.lt.s32.totalorder %s19, 1
      %s182 = scalar_select %p181, %s19, 1
      %p183 = scmp.lt.s32.totalorder %s20, 0
      %s184 = scalar_select %p183, %s20, 0
      %s185 = smul.addr %s182, 4
      %s186 = sadd.s32 %s184, %s185
      %s187 = smul.addr %s186, 2
      %s188 = scalar_lea.vmem %s0, %s187
      %p189 = pneg %p50
      %p190 = pneg %p47
      %p191 = scmp.lt.s32.totalorder %s19, 1
      %s192 = scalar_select %p191, %s19, 1
      %p193 = scmp.lt.s32.totalorder %s20, 0
      %s194 = scalar_select %p193, %s20, 0
      %s195 = sadd.s32 %s194, %s192
      %s196 = smul.addr %s195, 2
      %s197 = scalar_lea.vmem %s1, %s196
      %p198 = pneg %p78
      %p199 = pneg %p75
      %p200 = pneg %p106
      %p201 = pneg %p103
      %p202 = scmp.lt.s32.totalorder %s19, 1
      %s203 = scalar_select %p202, %s19, 1
      %p204 = scmp.lt.s32.totalorder %s20, 0
      %s205 = scalar_select %p204, %s20, 0
      %s206 = sadd.s32 %s205, %s203
      %s207 = scalar_lea.vmem %s2, %s206
      %p208 = pneg %p134
      %p209 = pneg %p131
      %p210 = scmp.lt.s32.totalorder %s19, 1
      %s211 = scalar_select %p210, %s19, 1
      %p212 = scmp.lt.s32.totalorder %s20, 0
      %s213 = scalar_select %p212, %s20, 0
      %s214 = sadd.s32 %s213, %s211
      %s215 = scalar_lea.vmem %s3, %s214
      %p216 = scmp.lt.s32.totalorder %s19, 1
      %s217 = scalar_select %p216, %s19, 1
      %p218 = scmp.lt.s32.totalorder %s20, 0
      %s219 = scalar_select %p218, %s20, 0
      %s220 = smul.addr %s217, 4
      %s221 = sadd.s32 %s219, %s220
      %s222 = smul.addr %s221, 2
      %s223 = scalar_lea.vmem %s0, %s222
      %p224 = scmp.lt.s32.totalorder %s19, 1
      %s225 = scalar_select %p224, %s19, 1
      %p226 = scmp.lt.s32.totalorder %s20, 0
      %s227 = scalar_select %p226, %s20, 0
      %s228 = sadd.s32 %s227, %s225
      %s229 = smul.addr %s228, 2
      %s230 = scalar_lea.vmem %s1, %s229
      %p231 = scmp.lt.s32.totalorder %s19, 1
      %s232 = scalar_select %p231, %s19, 1
      %p233 = scmp.lt.s32.totalorder %s20, 0
      %s234 = scalar_select %p233, %s20, 0
      %s235 = sadd.s32 %s234, %s232
      %s236 = scalar_lea.vmem %s2, %s235
      %p237 = scmp.lt.s32.totalorder %s19, 1
      %s238 = scalar_select %p237, %s19, 1
      %p239 = scmp.lt.s32.totalorder %s20, 0
      %s240 = scalar_select %p239, %s20, 0
      %s241 = sadd.s32 %s240, %s238
      %s242 = scalar_lea.vmem %s3, %s241
      %v243 = vld [vmem:[%s230] sm:$0x3]
      %v244 = vld [vmem:[%s223] sm:$0x3]
      %s245 = scalar_lea.vmem %s223, 2
      %v246 = vld [vmem:[%s245] sm:$0x3]
      %v247 = vmax.f32 %v244, %v246
      %vm248 = vcmp.eq.s32.totalorder %v243, 1
      %v249 = vsel %vm248, %v246, %v244
      %s250 = scalar_lea.vmem %s223, 4
      %v251 = vld [vmem:[%s250] sm:$0x3]
      %v252 = vmax.f32 %v247, %v251
      %vm253 = vcmp.eq.s32.totalorder %v243, 2
      %v254 = vsel %vm253, %v251, %v249
      %s255 = scalar_lea.vmem %s223, 6
      %v256 = vld [vmem:[%s255] sm:$0x3]
      %v257 = vmax.f32 %v252, %v256
      %vm258 = vcmp.eq.s32.totalorder %v243, 3
      %v259 = vsel %vm258, %v256, %v254
      %v260 = vsub.f32 %v244, %v257
      %v261 = vmul.f32 %v260, 1.442695
      %v262 = vpow.pop %v261
      %v263 = vadd.f32 %v262, 0.0
      %v264 = vsub.f32 %v246, %v257
      %v265 = vmul.f32 %v264, 1.442695
      %v266 = vpow.pop %v265
      %v267 = vadd.f32 %v263, %v266
      %v268 = vsub.f32 %v251, %v257
      %v269 = vmul.f32 %v268, 1.442695
      %v270 = vpow.pop %v269
      %v271 = vadd.f32 %v267, %v270
      %v272 = vsub.f32 %v256, %v257
      %v273 = vmul.f32 %v272, 1.442695
      %v274 = vpow.pop %v273
      %v275 = vadd.f32 %v271, %v274
      %vm276 = vcmp.ne.s32.totalorder %v243, 255
      %v277 = vlog2.pop %v275
      %v278 = vmul.f32 %v277, 0.6931472
      %v279 = vsub.f32 %v259, %v257
      %v280 = vsub.f32 %v278, %v279
      %v281 = vsel %vm276, %v280, 0.0
      %v282 = vsel %vm276, 1, 0
      %vm283 = vcmask 1041408
      %v284 = vsel %vm283, %v281, 0.0
      %285 = vadd.xlane.f32.xlu0 %v284
      %v286 = vpop.xlane.xlu0 %285
      %v287 = vrot.slane %v286, 4
      %v288 = vadd.f32 %v286, %v287
      %v289 = vrot.slane %v288, 2
      %v290 = vadd.f32 %v288, %v289
      %v291 = vrot.slane %v290, 1
      %v292 = vadd.f32 %v290, %v291
      %s293 = vtos %v292
      %v294 = vsel %vm283, %v282, 0
      %v295 = vand.u32 %v294, 65535
      %v296 = vshrl.u32 %v294, 16
      %v297 = vcvt.s32.f32 %v295
      %v298 = vcvt.s32.f32 %v296
      %299 = vadd.xlane.f32.xlu0 %v297
      %v300 = vpop.xlane.xlu0 %299
      %301 = vadd.xlane.f32.xlu0 %v298
      %v302 = vpop.xlane.xlu0 %301
      %v303 = vcvt.f32.s32 %v300
      %v304 = vcvt.f32.s32 %v302
      %v305 = vshll.u32 %v304, 16
      %v306 = vadd.s32 %v305, %v303
      %v307 = vrot.slane %v306, 4
      %v308 = vadd.s32 %v306, %v307
      %v309 = vrot.slane %v308, 2
      %v310 = vadd.s32 %v308, %v309
      %v311 = vrot.slane %v310, 1
      %v312 = vadd.s32 %v310, %v311
      %s313 = vtos %v312
      %v314 = vstv %s293
      %vm315 = vcmask 0
      %316 = vst.msk [vmem:[%s236] sm:$0x1] %vm315, %v314
      %v317 = vstv %s313
      %318 = vst.msk [vmem:[%s242] sm:$0x1] %vm315, %v317
      %p319 = scmp.lt.s32.totalorder %s19, 1
      %s320 = scalar_select %p319, %s19, 1
      %p321 = scmp.lt.s32.totalorder %s20, 0
      %s322 = scalar_select %p321, %s20, 0
      %s323 = sadd.s32 %s322, %s320
      %s324 = scalar_lea.vmem %s2, %s323
      %p325 = scmp.lt.s32.totalorder %s19, 1
      %s326 = scalar_select %p325, %s19, 1
      %p327 = scmp.lt.s32.totalorder %s20, 0
      %s328 = scalar_select %p327, %s20, 0
      %s329 = sadd.s32 %s328, %s326
      %s330 = scalar_lea.vmem %s3, %s329
      // Predicated region
      $region29: #{cross_entropy_loss_2d.1} parent=27 // pred_check
        %p331 = pneg %p103
      $region30: #{cross_entropy_loss_2d.1} parent=27 // pred_check_branch
        %333 = sbr.rel (%p331) target = $region32
      $region31: #{cross_entropy_loss_2d.1} parent=27 // pred_region
        _
      $region32: #{cross_entropy_loss_2d.1} parent=27 // pred_fallthru
        _
      // Predicated region
      $region33: #{cross_entropy_loss_2d.1} parent=27 // pred_check
        %p334 = pneg %p131
      $region34: #{cross_entropy_loss_2d.1} parent=27 // pred_check_branch
        %336 = sbr.rel (%p334) target = $region36
      $region35: #{cross_entropy_loss_2d.1} parent=27 // pred_region
        _
      $region36: #{cross_entropy_loss_2d.1} parent=27 // pred_fallthru
        _
    $region28: #{cross_entropy_loss_2d.1} parent=5 // pred_fallthru
      _
    %p337 = scmp.le.s32.totalorder 2, %s10
    // Predicated region
    $region37: #{cross_entropy_loss_2d.1} parent=5 // pred_check
      %p338 = pneg %p337
    $region38: #{cross_entropy_loss_2d.1} parent=5 // pred_check_branch
      %340 = sbr.rel (%p338) target = $region40
    $region39: #{cross_entropy_loss_2d.1} parent=5 // pred_region
      %s341 = ssub.s32 %s10, 2
      // Predicated region
      $region41: #{cross_entropy_loss_2d.1} parent=39 // pred_check
        %p342 = pneg %p109
      $region42: #{cross_entropy_loss_2d.1} parent=39 // pred_check_branch
        %344 = sbr.rel (%p342) target = $region44
      $region43: #{cross_entropy_loss_2d.1} parent=39 // pred_region
        %p345 = scmp.lt.s32.totalorder %s21, 1
        %s346 = scalar_select %p345, %s21, 1
        %p347 = scmp.lt.s32.totalorder %s22, 0
        %s348 = scalar_select %p347, %s22, 0
        %s349 = sadd.s32 %s348, %s346
        %s350 = scalar_lea.vmem %s2, %s349
      $region44: #{cross_entropy_loss_2d.1} parent=39 // pred_fallthru
        _
      // Predicated region
      $region45: #{cross_entropy_loss_2d.1} parent=39 // pred_check
        %p351 = pneg %p137
      $region46: #{cross_entropy_loss_2d.1} parent=39 // pred_check_branch
        %353 = sbr.rel (%p351) target = $region48
      $region47: #{cross_entropy_loss_2d.1} parent=39 // pred_region
        %p354 = scmp.lt.s32.totalorder %s21, 1
        %s355 = scalar_select %p354, %s21, 1
        %p356 = scmp.lt.s32.totalorder %s22, 0
        %s357 = scalar_select %p356, %s22, 0
        %s358 = sadd.s32 %s357, %s355
        %s359 = scalar_lea.vmem %s3, %s358
      $region48: #{cross_entropy_loss_2d.1} parent=39 // pred_fallthru
        _
    $region40: #{cross_entropy_loss_2d.1} parent=5 // pred_fallthru
      _
  $region6: #{cross_entropy_loss_2d.1} parent=0 // loop_footer
    %s14 = sadd.s32 1, %s10
  $region7: #{cross_entropy_loss_2d.1} parent=0 // loop_footer_branch
    %9 = sbr.rel target = $region3
  $region8: #{cross_entropy_loss_2d.1} parent=0 // loop_exit
    _

</llo_original>
